<compile_context>
chip_gen: v6e
topology: v6e:2x2x1
jax: 0.10.0
libtpu: 0.0.40
codegen_flags: <defaults>
</compile_context>

<pallas_src>
import functools

import jax
import jax.numpy as jnp
from jax.experimental import pallas as pl
from jax.experimental.pallas import tpu as pltpu


def _round_up(x: int, m: int) -> int:
    return ((x + m - 1) // m) * m


# ---------------------------------------------------------------------------
# Kernels
# ---------------------------------------------------------------------------
def _linear_kernel_single_k(x_ref, wt_ref, b_ref, o_ref):
    """Reduction collapsed into one block: y = x @ W^T + b in a single pass."""
    acc = jnp.dot(x_ref[...], wt_ref[...], preferred_element_type=jnp.float32)
    o_ref[...] = (acc + b_ref[...]).astype(o_ref.dtype)


def _linear_kernel_multi_k_f32(x_ref, wt_ref, b_ref, o_ref):
    """K-split, f32 output: accumulate directly into the resident output block
    (its (i, j) block index is constant across k). Bias seeds the accumulator,
    so there is no separate finalize pass and no VMEM scratch."""
    k = pl.program_id(2)

    @pl.when(k == 0)
    def _init():
        o_ref[...] = jnp.broadcast_to(b_ref[...], o_ref.shape)

    o_ref[...] += jnp.dot(x_ref[...], wt_ref[...],
                          preferred_element_type=jnp.float32)


def _linear_kernel_multi_k(x_ref, wt_ref, b_ref, o_ref, acc_ref):
    """K-split, generic output dtype: f32 VMEM accumulator + init/finalize."""
    k = pl.program_id(2)

    @pl.when(k == 0)
    def _init():
        acc_ref[...] = jnp.zeros_like(acc_ref)

    acc_ref[...] += jnp.dot(x_ref[...], wt_ref[...],
                            preferred_element_type=jnp.float32)

    @pl.when(k == pl.num_programs(2) - 1)
    def _finalize():
        o_ref[...] = (acc_ref[...] + b_ref[...]).astype(o_ref.dtype)


# ---------------------------------------------------------------------------
# Tile selection (done once per model, not per call)
# ---------------------------------------------------------------------------
_TM_CAP = 256
_VMEM_BUDGET = 32 * 1024 * 1024  # conservative: v7x has 64 MiB per TensorCore


def _choose_tn(out_p: int, tn_cap: int = 1024) -> int:
    """Largest lane-dense (multiple of 128) tile dividing out_p, <= cap, that
    leaves >= 2 N-blocks so both v7x TensorCores get work even when the batch
    fits a single M-block."""
    for t in range(min(tn_cap, out_p), 0, -128):
        if out_p % t == 0 and out_p // t >= 2:
            return t
    return min(out_p, tn_cap)  # out_p itself small: single block unavoidable


def _choose_tk(in_p: int, tn: int, out_bytes: int = 4,
               tk_cap: int = 2048, budget: int = _VMEM_BUDGET) -> int:
    """Collapse the reduction axis (tk = in_p) whenever the double-buffered
    footprint fits the budget; otherwise the largest dividing 128-multiple."""

    def footprint(tk: int) -> int:
        return (2 * _TM_CAP * tk * 2      # x tile, bf16, double buffered
                + 2 * tk * tn * 2         # W^T tile, bf16, double buffered
                + 2 * _TM_CAP * tn * out_bytes  # output tile, double buffered
                + _TM_CAP * tn * 4        # f32 accumulator (worst case)
                + 2 * tn * 4)             # bias tile

    if footprint(in_p) <= budget:
        return in_p
    for t in range(min(tk_cap, in_p), 0, -128):
        if in_p % t == 0 and footprint(t) <= budget:
            return t
    return 128


# ---------------------------------------------------------------------------
# Pallas linear forward (pad x -> kernel -> un-pad), fully under one jit.
# Weight / bias arrive already padded + cast (done once at model init).
# ---------------------------------------------------------------------------
@functools.partial(jax.jit, static_argnames=("out_features", "tn", "tk"))
def _linear_forward(x, wt_padded, bias_padded, *, out_features, tn, tk):
    B, IN = x.shape
    INp, OUTp = wt_padded.shape

    tm = min(_TM_CAP, _round_up(B, 8))
    Bp = _round_up(B, tm)

    xp = jnp.pad(x, ((0, Bp - B), (0, INp - IN))).astype(jnp.bfloat16)

    m_blocks = Bp // tm
    n_blocks = OUTp // tn
    k_blocks = INp // tk
    out_dtype = x.dtype
    out_bytes = jnp.dtype(out_dtype).itemsize

    cost = pl.CostEstimate(
        flops=2 * Bp * INp * OUTp,
        transcendentals=0,
        bytes_accessed=(xp.size * 2 + wt_padded.size * 2
                        + bias_padded.size * 4 + Bp * OUTp * out_bytes),
    )
    cparams_2d = pltpu.CompilerParams(
        dimension_semantics=("parallel", "parallel"),
        vmem_limit_bytes=40 * 1024 * 1024,
    )
    cparams_3d = pltpu.CompilerParams(
        dimension_semantics=("parallel", "parallel", "arbitrary"),
        vmem_limit_bytes=40 * 1024 * 1024,
    )

    if k_blocks == 1:
        # Weight-streaming regime: no reduction axis, no accumulator, each
        # weight byte is DMA'd exactly once.
        out_padded = pl.pallas_call(
            _linear_kernel_single_k,
            out_shape=jax.ShapeDtypeStruct((Bp, OUTp), out_dtype),
            grid_spec=pltpu.PrefetchScalarGridSpec(
                num_scalar_prefetch=0,
                grid=(m_blocks, n_blocks),
                in_specs=[
                    pl.BlockSpec((tm, tk), lambda i, j: (i, 0)),   # x
                    pl.BlockSpec((tk, tn), lambda i, j: (0, j)),   # W^T
                    pl.BlockSpec((1, tn), lambda i, j: (0, j)),    # bias
                ],
                out_specs=pl.BlockSpec((tm, tn), lambda i, j: (i, j)),
            ),
            compiler_params=cparams_2d,
            cost_estimate=cost,
        )(xp, wt_padded, bias_padded)
    elif out_dtype == jnp.float32:
        # K-split, f32 output: accumulate directly into the resident output.
        out_padded = pl.pallas_call(
            _linear_kernel_multi_k_f32,
            out_shape=jax.ShapeDtypeStruct((Bp, OUTp), out_dtype),
            grid_spec=pltpu.PrefetchScalarGridSpec(
                num_scalar_prefetch=0,
                grid=(m_blocks, n_blocks, k_blocks),
                in_specs=[
                    pl.BlockSpec((tm, tk), lambda i, j, k: (i, k)),
                    pl.BlockSpec((tk, tn), lambda i, j, k: (k, j)),
                    pl.BlockSpec((1, tn), lambda i, j, k: (0, j)),
                ],
                out_specs=pl.BlockSpec((tm, tn), lambda i, j, k: (i, j)),
            ),
            compiler_params=cparams_3d,
            cost_estimate=cost,
        )(xp, wt_padded, bias_padded)
    else:
        # K-split, generic output dtype: f32 VMEM accumulator.
        out_padded = pl.pallas_call(
            _linear_kernel_multi_k,
            out_shape=jax.ShapeDtypeStruct((Bp, OUTp), out_dtype),
            grid_spec=pltpu.PrefetchScalarGridSpec(
                num_scalar_prefetch=0,
                grid=(m_blocks, n_blocks, k_blocks),
                in_specs=[
                    pl.BlockSpec((tm, tk), lambda i, j, k: (i, k)),
                    pl.BlockSpec((tk, tn), lambda i, j, k: (k, j)),
                    pl.BlockSpec((1, tn), lambda i, j, k: (0, j)),
                ],
                out_specs=pl.BlockSpec((tm, tn), lambda i, j, k: (i, j)),
                scratch_shapes=[pltpu.VMEM((tm, tn), jnp.float32)],
            ),
            compiler_params=cparams_3d,
            cost_estimate=cost,
        )(xp, wt_padded, bias_padded)

    return out_padded[:B, :out_features]


# ---------------------------------------------------------------------------
# Wrapped "model": a Linear module backed by the Pallas kernel.
# Weight is transposed, padded and cast to bf16 ONCE here (weight-stationary).
# ---------------------------------------------------------------------------
class PallasLinearModel:
    def __init__(self, in_features, out_features, key):
        kw, kb = jax.random.split(key)
        bound = 1.0 / (in_features ** 0.5)
        self.weight = jax.random.uniform(
            kw, (out_features, in_features), jnp.float32, -bound, bound
        )
        self.bias = jax.random.uniform(
            kb, (out_features,), jnp.float32, -bound, bound
        )
        self.in_features = in_features
        self.out_features = out_features

        in_p = _round_up(in_features, 128)
        out_p = _round_up(out_features, 128)
        self._tn = _choose_tn(out_p)
        self._tk = _choose_tk(in_p, self._tn)

        # One-time pad + cast: never touched again on the hot path.
        wt = self.weight.T  # [IN, OUT]
        self.weight_t_padded = jnp.pad(
            wt, ((0, in_p - in_features), (0, out_p - out_features))
        ).astype(jnp.bfloat16)
        self.bias_padded = (
            jnp.pad(self.bias, (0, out_p - out_features))
            .reshape(1, out_p)
            .astype(jnp.float32)
        )

    def __call__(self, x):
        return _linear_forward(
            x, self.weight_t_padded, self.bias_padded,
            out_features=self.out_features, tn=self._tn, tk=self._tk,
        )


# ---------------------------------------------------------------------------
# AddNameWrapper: exact semantics of the PyTorch module -- store the wrapped
# model under a dynamic attribute name and delegate forward() via getattr.
# (Pure Python delegation; no kernel equivalent needed.)
# ---------------------------------------------------------------------------
class AddNameWrapper:
    def __init__(self, model, name):
        self.model_name = name
        setattr(self, name, model)

    def __call__(self, *args, **kwargs):
        return getattr(self, self.model_name)(*args, **kwargs)


if __name__ == "__main__":
    key = jax.random.PRNGKey(0)
    k_model, k_x = jax.random.split(key)

    # Small shapes; IN/OUT deliberately NOT multiples of 128 to exercise the
    # lane-dense padding + un-padding path.
    batch, in_features, out_features = 8, 96, 200

    inner = PallasLinearModel(in_features, out_features, k_model)
    wrapped = AddNameWrapper(inner, "actor")  # arbitrary name, like easyrl usage

    x = jax.random.normal(k_x, (batch, in_features), jnp.float32)

    y = wrapped(x)
    y = jax.block_until_ready(y)

    # Reference in f32; kernel uses bf16 MXU inputs with f32 accumulation, so
    # allow the standard bf16 tolerance.
    y_ref = x @ inner.weight.T + inner.bias
    assert y.shape == y_ref.shape, "shape mismatch vs reference"
    assert jnp.allclose(y, y_ref, atol=3e-2, rtol=3e-2), "mismatch vs reference"

    print("KERNEL_OK")
</pallas_src>

<mosaic_0001>
module attributes {stable_mosaic.version = 11 : i64} {
  func.func @_linear_kernel_single_k(%arg0: i32, %arg1: i32, %arg2: memref<8x128xbf16, #tpu.memory_space<vmem>>, %arg3: memref<128x128xbf16, #tpu.memory_space<vmem>>, %arg4: memref<1x128xf32, #tpu.memory_space<vmem>>, %arg5: memref<8x128xf32, #tpu.memory_space<vmem>>) attributes {dimension_semantics = [#tpu.dimension_semantics<parallel>, #tpu.dimension_semantics<parallel>], iteration_bounds = array<i64: 1, 2>, scalar_prefetch = 0 : i64, scratch_operands = 0 : i64, tpu.core_type = #tpu.core_type<tc>, window_params = [{transform_indices = @transform_0, window_bounds = array<i64: 8, 128>}, {transform_indices = @transform_1, window_bounds = array<i64: 128, 128>}, {transform_indices = @transform_2, window_bounds = array<i64: 1, 128>}, {transform_indices = @transform_3, window_bounds = array<i64: 8, 128>}]} {
    %c0 = arith.constant 0 : index
    %c0_0 = arith.constant 0 : index
    %0 = vector.load %arg2[%c0, %c0_0] : memref<8x128xbf16, #tpu.memory_space<vmem>>, vector<8x128xbf16>
    %c0_1 = arith.constant 0 : index
    %c0_2 = arith.constant 0 : index
    %1 = vector.load %arg3[%c0_1, %c0_2] : memref<128x128xbf16, #tpu.memory_space<vmem>>, vector<128x128xbf16>
    %cst = arith.constant dense<0.000000e+00> : vector<8x128xf32>
    %2 = tpu.matmul %0, %1, %cst {dimension_numbers = #tpu.dot_dimension_numbers<[1], [0], [0], [1], [0, 0, 1, 1], [], []>} : vector<8x128xbf16>, vector<128x128xbf16>, vector<8x128xf32> -> vector<8x128xf32>
    %c0_3 = arith.constant 0 : index
    %c0_4 = arith.constant 0 : index
    %3 = vector.load %arg4[%c0_3, %c0_4] : memref<1x128xf32, #tpu.memory_space<vmem>>, vector<1x128xf32>
    %4 = vector.broadcast %3 : vector<1x128xf32> to vector<8x128xf32>
    %5 = arith.addf %2, %4 : vector<8x128xf32>
    %c0_5 = arith.constant 0 : index
    %c0_6 = arith.constant 0 : index
    %6 = vector.load %arg5[%c0_5, %c0_6] : memref<8x128xf32, #tpu.memory_space<vmem>>, vector<8x128xf32>
    tpu.vector_store %arg5[%c0_5, %c0_6], %5 {strides = array<i32>} : memref<8x128xf32, #tpu.memory_space<vmem>>, vector<8x128xf32>,
    return
  }
  func.func @transform_0(%arg0: i32, %arg1: i32) -> (i32, i32) {
    %c0_i32 = arith.constant 0 : i32
    %c0_i32_0 = arith.constant 0 : i32
    return %arg0, %c0_i32 : i32, i32
  }
  func.func @transform_1(%arg0: i32, %arg1: i32) -> (i32, i32) {
    %c0_i32 = arith.constant 0 : i32
    %c0_i32_0 = arith.constant 0 : i32
    return %c0_i32, %arg1 : i32, i32
  }
  func.func @transform_2(%arg0: i32, %arg1: i32) -> (i32, i32) {
    %c0_i32 = arith.constant 0 : i32
    %c0_i32_0 = arith.constant 0 : i32
    return %c0_i32, %arg1 : i32, i32
  }
  func.func @transform_3(%arg0: i32, %arg1: i32) -> (i32, i32) {
    %c0_i32 = arith.constant 0 : i32
    return %arg0, %arg1 : i32, i32
  }
}

</mosaic_0001>

<llo_original>
// kernel: _linear_forward.1
$region0: #{_linear_forward.1}
  #allocation0 [shape = 'u32[]', space=smem, size = 0x4, offset = 0x4, fixed_abs, tag = 'smem constant byte address 0x4 - core index']
  #allocation1 [shape = 'u32[144,128]{1,0:T(1,128)}', space=vmem, size = 0x12000, scoped, tag = 'internal scratch']
  %s0 = inlined_call_operand.vmem [shape: bf16[8,128], index: 0, kind: input, shape index: {}]
  %s1 = inlined_call_operand.hbm [shape: bf16[128,256], index: 1, kind: input, shape index: {}]
  %s2 = inlined_call_operand.vmem [shape: f32[1,256], index: 2, kind: input, shape index: {}]
  %s3 = inlined_call_operand.hbm [shape: f32[8,256], index: 3, kind: output, shape index: {}]
  %s4 = sld [smem:[#allocation0]]
  $region49: #{_linear_forward.1} parent=0
    _
  %s6 = ssub.s32 1, %s4
  %s7 = scalar_select 0, %s6, %s4
  $region1: #{_linear_forward.1} parent=0
    #allocation2 [shape = 'u8[65536]{0}', space=vmem, size = 0x10000, scoped, tag = 'input window, operand 1']
    #allocation3 [shape = 's32[2]{0}', space=sflag, size = 0x8, scoped, tag = 'scoped memory for _linear_forward.1']
    #allocation4 [shape = 's32[2]{0}', space=sflag, size = 0x8, scoped, tag = 'scoped memory for _linear_forward.1']
    #allocation5 [shape = 'u8[8192]{0}', space=vmem, size = 0x2000, scoped, tag = 'output window, operand 0']
    %8 = vsyncpa [#allocation3], 0
    %s9 = scalar_lea.sflag [#allocation3], 1
    %10 = vsyncpa %s9, 0
    %11 = vsyncpa [#allocation4], 0
    %s12 = scalar_lea.sflag [#allocation4], 1
    %13 = vsyncpa %s12, 0
    loop: start=0, step=1, limit=4
    $region2: #{_linear_forward.1} parent=1 // loop_pre_header
      _
    $region3: #{_linear_forward.1} parent=1 // loop_header
      %s15 = sphi 0, %s19
      %p16 = scmp.ge.s32.totalorder %s15, 4
      %s22 = sphi 0, %s34
      %s23 = sphi 0, %s30
      %s24 = sphi 0, %s22
      %s25 = sphi 0, %s23
      %s26 = sphi 0, %s24
      %s27 = sphi 0, %s25
      %s37 = sphi 0, %s39
      %s40 = sphi 0, %s37
      %s41 = sphi 0, %s40
      %s57 = sphi 0, %s41
      %s63 = sphi 0, %s65
      %s66 = sphi 0, %s63
      %s67 = sphi 0, %s66
      %s83 = sphi 0, %s67
      %s89 = sphi 0, %s91
      %s92 = sphi 0, %s89
      %s93 = sphi 0, %s92
      %s109 = sphi 0, %s93
      %s117 = sphi 0, %s119
      %s120 = sphi 0, %s117
      %s121 = sphi 0, %s120
      %s137 = sphi 0, %s121
    $region4: #{_linear_forward.1} parent=1 // loop_header_branch
      %18 = sbr.rel (%p16) target = $region8
    $region5: #{_linear_forward.1} parent=1 // loop_body
      %s20 = ssub.s32 %s15, 1
      %s21 = ssub.s32 %s15, 2
      %s28 = sadd.s32 1, %s23
      %p29 = scmp.ge.s32.totalorder %s28, 2
      %s30 = scalar_select %p29, 0, %s28
      %s31 = sadd.s32 1, %s22
      %s32 = scalar_select %p29, %s31, %s22
      %p33 = scmp.ge.s32.totalorder %s32, 1
      %s34 = scalar_select %p33, 0, %s32
      %s35 = ssub.s32 %s22, %s34
      %p36 = scmp.eq.s32.totalorder %s35, 0
      %s38 = sadd.s32 %s37, 1
      %s39 = scalar_select %p36, %s37, %s38
      %p42 = pneg %p36
      %p43 = scmp.eq.s32.totalorder %s15, 1
      %p44 = por %p42, %p43
      %p45 = scmp.ne.s32.totalorder %s37, %s40
      %p46 = scmp.eq.s32.totalorder %s15, 0
      %p47 = por %p45, %p46
      %p48 = scmp.ne.s32.totalorder %s37, %s40
      %p49 = scmp.eq.s32.totalorder %s20, 1
      %p50 = por %p48, %p49
      %p51 = scmp.ne.s32.totalorder %s40, %s41
      %p52 = scmp.eq.s32.totalorder %s20, 0
      %p53 = por %p51, %p52
      %p54 = scmp.ne.s32.totalorder %s40, %s41
      %p55 = scmp.eq.s32.totalorder %s21, 1
      %p56 = por %p54, %p55
      %p58 = scmp.ne.s32.totalorder %s41, %s57
      %p59 = scmp.eq.s32.totalorder %s21, 0
      %p60 = por %p58, %p59
      %s61 = ssub.s32 %s23, %s30
      %p62 = scmp.eq.s32.totalorder %s61, 0
      %s64 = sadd.s32 %s63, 1
      %s65 = scalar_select %p62, %s63, %s64
      %p68 = pneg %p62
      %p69 = scmp.eq.s32.totalorder %s15, 1
      %p70 = por %p68, %p69
      %p71 = scmp.ne.s32.totalorder %s63, %s66
      %p72 = scmp.eq.s32.totalorder %s15, 0
      %p73 = por %p71, %p72
      %p74 = scmp.ne.s32.totalorder %s63, %s66
      %p75 = scmp.eq.s32.totalorder %s20, 1
      %p76 = por %p74, %p75
      %p77 = scmp.ne.s32.totalorder %s66, %s67
      %p78 = scmp.eq.s32.totalorder %s20, 0
      %p79 = por %p77, %p78
      %p80 = scmp.ne.s32.totalorder %s66, %s67
      %p81 = scmp.eq.s32.totalorder %s21, 1
      %p82 = por %p80, %p81
      %p84 = scmp.ne.s32.totalorder %s67, %s83
      %p85 = scmp.eq.s32.totalorder %s21, 0
      %p86 = por %p84, %p85
      %s87 = ssub.s32 %s23, %s30
      %p88 = scmp.eq.s32.totalorder %s87, 0
      %s90 = sadd.s32 %s89, 1
      %s91 = scalar_select %p88, %s89, %s90
      %p94 = pneg %p88
      %p95 = scmp.eq.s32.totalorder %s15, 1
      %p96 = por %p94, %p95
      %p97 = scmp.ne.s32.totalorder %s89, %s92
      %p98 = scmp.eq.s32.totalorder %s15, 0
      %p99 = por %p97, %p98
      %p100 = scmp.ne.s32.totalorder %s89, %s92
      %p101 = scmp.eq.s32.totalorder %s20, 1
      %p102 = por %p100, %p101
      %p103 = scmp.ne.s32.totalorder %s92, %s93
      %p104 = scmp.eq.s32.totalorder %s20, 0
      %p105 = por %p103, %p104
      %p106 = scmp.ne.s32.totalorder %s92, %s93
      %p107 = scmp.eq.s32.totalorder %s21, 1
      %p108 = por %p106, %p107
      %p110 = scmp.ne.s32.totalorder %s93, %s109
      %p111 = scmp.eq.s32.totalorder %s21, 0
      %p112 = por %p110, %p111
      %s113 = ssub.s32 %s22, %s34
      %s114 = ssub.s32 %s23, %s30
      %s115 = sor.u32 %s113, %s114
      %p116 = scmp.eq.s32.totalorder %s115, 0
      %s118 = sadd.s32 %s117, 1
      %s119 = scalar_select %p116, %s117, %s118
      %p122 = pneg %p116
      %p123 = scmp.eq.s32.totalorder %s15, 1
      %p124 = por %p122, %p123
      %p125 = scmp.ne.s32.totalorder %s117, %s120
      %p126 = scmp.eq.s32.totalorder %s15, 0
      %p127 = por %p125, %p126
      %p128 = scmp.ne.s32.totalorder %s117, %s120
      %p129 = scmp.eq.s32.totalorder %s20, 1
      %p130 = por %p128, %p129
      %p131 = scmp.ne.s32.totalorder %s120, %s121
      %p132 = scmp.eq.s32.totalorder %s20, 0
      %p133 = por %p131, %p132
      %p134 = scmp.ne.s32.totalorder %s120, %s121
      %p135 = scmp.eq.s32.totalorder %s21, 1
      %p136 = por %p134, %p135
      %p138 = scmp.ne.s32.totalorder %s121, %s137
      %p139 = scmp.eq.s32.totalorder %s21, 0
      %p140 = por %p138, %p139
      %p141 = scmp.le.s32.totalorder 1, %s15
      %p142 = scmp.lt.s32.totalorder %s15, 3
      %p143 = pnand %p141, %p142
      %p144 = pneg %p143
      // Predicated region
      $region9: #{_linear_forward.1} parent=5 // pred_check
        _
      $region10: #{_linear_forward.1} parent=5 // pred_check_branch
        %146 = sbr.rel (%p143) target = $region12
      $region11: #{_linear_forward.1} parent=5 // pred_region
        %s147 = ssub.s32 %s15, 1
        // Predicated region
        $region13: #{_linear_forward.1} parent=11 // pred_check
          %p148 = pneg %p53
        $region14: #{_linear_forward.1} parent=11 // pred_check_branch
          %150 = sbr.rel (%p148) target = $region16
        $region15: #{_linear_forward.1} parent=11 // pred_region
          %p151 = scmp.lt.s32.totalorder %s24, 0
          %s152 = scalar_select %p151, %s24, 0
          %s153 = smul.addr %s152, 4
          %s154 = scalar_lea.vmem %s0, %s153
        $region16: #{_linear_forward.1} parent=11 // pred_fallthru
          _
      $region12: #{_linear_forward.1} parent=5 // pred_fallthru
        _
      %p155 = scmp.lt.s32.totalorder %s15, 2
      // Predicated region
      $region17: #{_linear_forward.1} parent=5 // pred_check
        %p156 = pneg %p155
      $region18: #{_linear_forward.1} parent=5 // pred_check_branch
        %158 = sbr.rel (%p156) target = $region20
      $region19: #{_linear_forward.1} parent=5 // pred_region
        // Predicated region
        $region21: #{_linear_forward.1} parent=19 // pred_check
          %p159 = pneg %p73
        $region22: #{_linear_forward.1} parent=19 // pred_check_branch
          %161 = sbr.rel (%p159) target = $region24
        $region23: #{_linear_forward.1} parent=19 // pred_region
          %s162 = sand.u32 %s63, 1
          %s163 = scalar_lea.sflag [#allocation3], %s162
          %s164 = sand.u32 %s63, 1
          %s165 = smul.addr %s164, 64
          %s166 = scalar_lea.vmem [#allocation2], %s165
          %s168 = ssub.s32 1024, 1024
          %169 = vsyncadd %s163, %s168
          %s170 = smul.addr %s23, 64
          %s171 = scalar_lea.hbm %s1, %s170
          %s172 = sshll.u32 %s166, 4
          %s173 = int_to_ptr.vmem [resolvable:$true] %s172
          %178 = dma.hbm_to_vmem [thread:$0]  %s171, 1024, %s173, %s163, 128, 64, 4
        $region24: #{_linear_forward.1} parent=19 // pred_fallthru
          _
        // Predicated region
        $region25: #{_linear_forward.1} parent=19 // pred_check
          %p179 = pneg %p99
        $region26: #{_linear_forward.1} parent=19 // pred_check_branch
          %181 = sbr.rel (%p179) target = $region28
        $region27: #{_linear_forward.1} parent=19 // pred_region
          %p182 = scmp.lt.s32.totalorder %s23, 1
          %s183 = scalar_select %p182, %s23, 1
          %s184 = scalar_lea.vmem %s2, %s183
        $region28: #{_linear_forward.1} parent=19 // pred_fallthru
          _
      $region20: #{_linear_forward.1} parent=5 // pred_fallthru
        _
      %p185 = scmp.le.s32.totalorder 1, %s15
      %p186 = scmp.lt.s32.totalorder %s15, 3
      %p187 = pnand %p185, %p186
      %p188 = pneg %p187
      // Predicated region
      $region29: #{_linear_forward.1} parent=5 // pred_check
        _
      $region30: #{_linear_forward.1} parent=5 // pred_check_branch
        %190 = sbr.rel (%p187) target = $region32
      $region31: #{_linear_forward.1} parent=5 // pred_region
        %s191 = ssub.s32 %s15, 1
        %s192 = sand.u32 %s66, 1
        %s193 = scalar_lea.sflag [#allocation3], %s192
        %s194 = sand.u32 %s66, 1
        %s195 = smul.addr %s194, 64
        %s196 = scalar_lea.vmem [#allocation2], %s195
        // Predicated region
        $region33: #{_linear_forward.1} parent=31 // pred_check
          %p197 = pneg %p79
        $region34: #{_linear_forward.1} parent=31 // pred_check_branch
          %199 = sbr.rel (%p197) target = $region36
        $region35: #{_linear_forward.1} parent=31 // pred_region
          %200 = dma.done %s193, 1024
        $region36: #{_linear_forward.1} parent=31 // pred_fallthru
          _
        %p201 = scmp.lt.s32.totalorder %s24, 0
        %s202 = scalar_select %p201, %s24, 0
        %s203 = smul.addr %s202, 4
        %s204 = scalar_lea.vmem %s0, %s203
        %p205 = pneg %p53
        %p206 = pneg %p50
        %s207 = sand.u32 %s66, 1
        %s208 = scalar_lea.sflag [#allocation3], %s207
        %s209 = sand.u32 %s66, 1
        %s210 = smul.addr %s209, 64
        %s211 = scalar_lea.vmem [#allocation2], %s210
        %p212 = pneg %p79
        %p213 = pneg %p76
        %p214 = scmp.lt.s32.totalorder %s25, 1
        %s215 = scalar_select %p214, %s25, 1
        %s216 = scalar_lea.vmem %s2, %s215
        %p217 = pneg %p105
        %p218 = pneg %p102
        %p219 = pneg %p133
        %p220 = pneg %p130
        %s221 = sand.u32 %s120, 1
        %s222 = scalar_lea.sflag [#allocation4], %s221
        %s223 = sand.u32 %s120, 1
        %s224 = smul.addr %s223, 8
        %s225 = scalar_lea.vmem [#allocation5], %s224
        %p226 = scmp.lt.s32.totalorder %s24, 0
        %s227 = scalar_select %p226, %s24, 0
        %s228 = smul.addr %s227, 4
        %s229 = scalar_lea.vmem %s0, %s228
        %p230 = scmp.lt.s32.totalorder %s25, 1
        %s231 = scalar_select %p230, %s25, 1
        %s232 = scalar_lea.vmem %s2, %s231
        %v234 = vld [vmem:[%s229] sm:$0xf]
        %v235 = vld [vmem:[%s196] sm:$0xf]
        %v236 = vld [vmem:[%s196 + $0x4] sm:$0xf]
        %v237 = vld [vmem:[%s196 + $0x8] sm:$0xf]
        %v238 = vld [vmem:[%s196 + $0xc] sm:$0xf]
        %v239 = vld [vmem:[%s196 + $0x10] sm:$0xf]
        %v240 = vld [vmem:[%s196 + $0x14] sm:$0xf]
        %v241 = vld [vmem:[%s196 + $0x18] sm:$0xf]
        %v242 = vld [vmem:[%s196 + $0x1c] sm:$0xf]
        %v243 = vld [vmem:[%s196 + $0x20] sm:$0xf]
        %v244 = vld [vmem:[%s196 + $0x24] sm:$0xf]
        %v245 = vld [vmem:[%s196 + $0x28] sm:$0xf]
        %v246 = vld [vmem:[%s196 + $0x2c] sm:$0xf]
        %v247 = vld [vmem:[%s196 + $0x30] sm:$0xf]
        %v248 = vld [vmem:[%s196 + $0x34] sm:$0xf]
        %v249 = vld [vmem:[%s196 + $0x38] sm:$0xf]
        %v250 = vld [vmem:[%s196 + $0x3c] sm:$0xf]
        %v251 = vld [vmem:[%s232] sm:$0x1]
        %v253 = vlaneseq
        %v254 = vshrl.u32 %v253, 7
        %v255 = vsub.s32 0, %v254
        %v256 = vrot.slane %v251, %v255
        %v274 = vunpack.c.l.b16 %v235
        %v275 = vunpack.c.l.b16 %v236
        %v276 = vunpack.c.l.b16 %v237
        %v277 = vunpack.c.l.b16 %v238
        %v278 = vunpack.c.l.b16 %v239
        %v279 = vunpack.c.l.b16 %v240
        %v280 = vunpack.c.l.b16 %v241
        %v281 = vunpack.c.l.b16 %v242
        %v282 = vunpack.c.l.b16 %v243
        %v283 = vunpack.c.l.b16 %v244
        %v284 = vunpack.c.l.b16 %v245
        %v285 = vunpack.c.l.b16 %v246
        %v286 = vunpack.c.l.b16 %v247
        %v287 = vunpack.c.l.b16 %v248
        %v288 = vunpack.c.l.b16 %v249
        %v289 = vunpack.c.l.b16 %v250
        %v290 = vpack.c.b16 %v275, %v274
        %v291 = vpack.c.b16 %v277, %v276
        %v292 = vpack.c.b16 %v279, %v278
        %v293 = vpack.c.b16 %v281, %v280
        %v294 = vpack.c.b16 %v283, %v282
        %v295 = vpack.c.b16 %v285, %v284
        %v296 = vpack.c.b16 %v287, %v286
        %v297 = vpack.c.b16 %v289, %v288
        %306 = vmatprep.subr.bf16.mxu0 0
        %307 = vmatpush1.bf16.msra.mxu0 %v297
        %308 = vmatprep.subr.bf16.mxu0 0
        %309 = vmatpush1.bf16.msra.mxu0 %v296
        %310 = vmatprep.subr.bf16.mxu0 0
        %311 = vmatpush1.bf16.msra.mxu0 %v295
        %312 = vmatprep.subr.bf16.mxu0 0
        %313 = vmatpush1.bf16.msra.mxu0 %v294
        %314 = vmatprep.subr.bf16.mxu0 0
        %315 = vmatpush1.bf16.msra.mxu0 %v293
        %316 = vmatprep.subr.bf16.mxu0 0
        %317 = vmatpush1.bf16.msra.mxu0 %v292
        %318 = vmatprep.subr.bf16.mxu0 0
        %319 = vmatpush1.bf16.msra.mxu0 %v291
        %320 = vmatprep.subr.bf16.mxu0 0
        %321 = vmatpush1.bf16.msra.mxu0 %v290
        %322 = vmatprep.subr.bf16.mxu0 0
        %323 = vmatpush2.bf16.msra.mxu0 0
        %324 = vmatprep.subr.bf16.mxu0 0
        %325 = vmatpush2.bf16.msra.mxu0 0
        %326 = vmatprep.subr.bf16.mxu0 0
        %327 = vmatpush2.bf16.msra.mxu0 0
        %328 = vmatprep.subr.bf16.mxu0 0
        %329 = vmatpush2.bf16.msra.mxu0 0
        %330 = vmatprep.subr.bf16.mxu0 0
        %331 = vmatpush2.bf16.msra.mxu0 0
        %332 = vmatprep.subr.bf16.mxu0 0
        %333 = vmatpush2.bf16.msra.mxu0 0
        %334 = vmatprep.subr.bf16.mxu0 0
        %335 = vmatpush2.bf16.msra.mxu0 0
        %336 = vmatprep.subr.bf16.mxu0 0
        %337 = vmatpush2.bf16.msra.mxu0 0
        %338 = vmatprep.mubr.bf16.mxu0 0
        %339 = vmatmul.mubr.bf16.gmra.mxu0 %v234
        %v340 = vpop.f32.mrf.mxu0
        %v341 = vadd.f32 %v256, %v340
        %v342 = vpop.f32.mrf.mxu0
        %v343 = vpop.f32.mrf.mxu0
        %v344 = vpop.f32.mrf.mxu0
        %345 = vdwg.mxu0
        %346 = vst [vmem:[%s225] sm:$0xff] %v341
        %s347 = sand.u32 %s120, 1
        %s348 = scalar_lea.sflag [#allocation4], %s347
        %s349 = sand.u32 %s120, 1
        %s350 = smul.addr %s349, 8
        %s351 = scalar_lea.vmem [#allocation5], %s350
        // Predicated region
        $region37: #{_linear_forward.1} parent=31 // pred_check
          %p352 = pneg %p130
        $region38: #{_linear_forward.1} parent=31 // pred_check_branch
          %354 = sbr.rel (%p352) target = $region40
        $region39: #{_linear_forward.1} parent=31 // pred_region
          %s356 = ssub.s32 128, 128
          %357 = vsyncadd %s348, %s356
          %s358 = smul.addr %s24, 2
          %s359 = sadd.s32 %s25, %s358
          %s360 = smul.addr %s359, 128
          %s361 = scalar_lea.hbm %s3, %s360
          %s363 = sshll.u32 %s351, 4
          %s364 = int_to_ptr.vmem [resolvable:$true] %s363
          %366 = dma.vmem_to_hbm [thread:$0]  %s364, 128, %s361, %s348
        $region40: #{_linear_forward.1} parent=31 // pred_fallthru
          _
      $region32: #{_linear_forward.1} parent=5 // pred_fallthru
        _
      %p367 = scmp.le.s32.totalorder 2, %s15
      // Predicated region
      $region41: #{_linear_forward.1} parent=5 // pred_check
        %p368 = pneg %p367
      $region42: #{_linear_forward.1} parent=5 // pred_check_branch
        %370 = sbr.rel (%p368) target = $region44
      $region43: #{_linear_forward.1} parent=5 // pred_region
        %s371 = ssub.s32 %s15, 2
        // Predicated region
        $region45: #{_linear_forward.1} parent=43 // pred_check
          %p372 = pneg %p136
        $region46: #{_linear_forward.1} parent=43 // pred_check_branch
          %374 = sbr.rel (%p372) target = $region48
        $region47: #{_linear_forward.1} parent=43 // pred_region
          %s375 = sand.u32 %s121, 1
          %s376 = scalar_lea.sflag [#allocation4], %s375
          %s377 = sand.u32 %s121, 1
          %s378 = smul.addr %s377, 8
          %s379 = scalar_lea.vmem [#allocation5], %s378
          %380 = dma.done %s376, 128
        $region48: #{_linear_forward.1} parent=43 // pred_fallthru
          _
      $region44: #{_linear_forward.1} parent=5 // pred_fallthru
        _
    $region6: #{_linear_forward.1} parent=1 // loop_footer
      %s19 = sadd.s32 1, %s15
    $region7: #{_linear_forward.1} parent=1 // loop_footer_branch
      %14 = sbr.rel target = $region3
    $region8: #{_linear_forward.1} parent=1 // loop_exit
      _
    %381 = vsyncpa [#allocation3], 1
    %s382 = scalar_lea.sflag [#allocation3], 1
    %383 = vsyncpa %s382, 1
    %384 = vsyncpa [#allocation4], 1
    %s385 = scalar_lea.sflag [#allocation4], 1
    %386 = vsyncpa %s385, 1

</llo_original>
